<compile_context>
chip_gen: v5e
topology: v5e:2x2
jax: 0.10.0
libtpu: 0.0.40
codegen_flags: <defaults>
</compile_context>

<pallas_src>
import functools

import jax
import jax.numpy as jnp
from jax.experimental import pallas as pl
from jax.experimental.pallas import tpu as pltpu


def _round_up(x, m):
    return ((x + m - 1) // m) * m


def _vmem_physical_bytes():
    """Physical VMEM of the local chip (conservative fallback = v7x 64 MiB)."""
    try:
        return int(pltpu.get_tpu_info().vmem_capacity_bytes)
    except Exception:
        return 64 << 20


# --------------------------------------------------------------------------- #
# Kernel body
# --------------------------------------------------------------------------- #
def _mlp_kernel(*refs, num_layers, act_lim):
    # refs = (obs_ref, w0, b0, w1, b1, ..., w_{L-1}, b_{L-1}, out_ref)
    obs_ref = refs[0]
    out_ref = refs[-1]
    param_refs = refs[1:-1]

    x = obs_ref[...]                              # (tb, in_pad0) bf16
    for i in range(num_layers):
        w = param_refs[2 * i][...]                # (in_pad, out_pad) bf16, VMEM-resident
        b = param_refs[2 * i + 1][...]            # (1, out_pad) f32
        # bf16 MXU matmul, f32 accumulate; bias broadcast at the f32 add.
        y = jnp.dot(x, w, preferred_element_type=jnp.float32) + b
        if i < num_layers - 1:
            # f32 ReLU epilogue, then carry activations in bf16 (the next dot
            # needed a bf16 cast anyway) -> smaller fused intermediates.
            x = jnp.maximum(y, 0.0).astype(jnp.bfloat16)
        else:
            x = act_lim * jnp.tanh(y)             # final: act_lim * tanh (EUP), f32
    out_ref[...] = x.astype(out_ref.dtype)


# --------------------------------------------------------------------------- #
# One-time parameter preparation (hoisted out of the per-call hot path)
# --------------------------------------------------------------------------- #
def prepare_params(weights, biases):
    """weights[i]: (in_i, out_i) == torch W_i.T, biases[i]: (out_i,) or (1,out_i).

    Returns (padded_weights_bf16, padded_biases_f32, act_dim).  Hidden/output
    dims are lane-padded to 128 (lane-dense activations and stores); the first
    K dim only needs bf16 sublane alignment (16).  Zero padding is exact for
    this MLP (padded lanes stay 0 through bias-add, ReLU and tanh)."""
    num_layers = len(weights)
    in_dims = [w.shape[0] for w in weights]
    out_dims = [w.shape[1] for w in weights]
    in_pad = [_round_up(in_dims[0], 16)] + [_round_up(d, 128) for d in in_dims[1:]]
    out_pad = [_round_up(d, 128) for d in out_dims]

    ws, bs = [], []
    for li in range(num_layers):
        wp = jnp.zeros((in_pad[li], out_pad[li]), jnp.bfloat16)
        wp = wp.at[:in_dims[li], :out_dims[li]].set(weights[li].astype(jnp.bfloat16))
        bp = jnp.zeros((1, out_pad[li]), jnp.float32)
        bp = bp.at[:, :out_dims[li]].set(
            jnp.reshape(biases[li], (1, -1)).astype(jnp.float32))
        ws.append(wp)
        bs.append(bp)
    return tuple(ws), tuple(bs), out_dims[-1]


# --------------------------------------------------------------------------- #
# Forward pass
# --------------------------------------------------------------------------- #
def policy_network_forward(obs, weights, biases, *, act_dim, act_lim,
                           batch_tile=1024, out_dtype=jnp.float32):
    """obs: (batch, obs_dim) any float dtype.
    weights/biases: outputs of prepare_params (pre-padded bf16 / f32).
    Returns (batch, act_dim) in out_dtype."""
    num_layers = len(weights)
    batch, obs_dim = obs.shape
    in_pad = [w.shape[0] for w in weights]
    out_pad = [w.shape[1] for w in weights]
    assert obs_dim <= in_pad[0]

    # ---- batch tile selection (bf16 sublane alignment = 16) ---------------
    ALIGN = 16
    bp_min = _round_up(batch, ALIGN)
    tb = _round_up(min(batch_tile, bp_min), ALIGN)
    # Guarantee >= 2 grid steps when the batch allows it, so the "parallel"
    # batch axis can be sharded across both v7x TensorCores.
    if bp_min // tb < 2 and bp_min > ALIGN:
        tb = _round_up(pl.cdiv(batch, 2), ALIGN)
    batch_p = _round_up(batch, tb)
    grid = (batch_p // tb,)

    # ---- obs: bf16 DMA, pad only rows + the tiny first-K dim --------------
    obs_bf = obs.astype(jnp.bfloat16)
    if (batch_p, in_pad[0]) != (batch, obs_dim):
        obs_bf = jnp.pad(obs_bf, ((0, batch_p - batch), (0, in_pad[0] - obs_dim)))

    args = [obs_bf]
    in_specs = [pl.BlockSpec((tb, in_pad[0]), lambda i: (i, 0))]
    for li in range(num_layers):
        args.append(weights[li])
        args.append(biases[li])
        # Constant index_map -> weights/biases stay VMEM-resident across steps.
        in_specs.append(pl.BlockSpec((in_pad[li], out_pad[li]), lambda i: (0, 0)))
        in_specs.append(pl.BlockSpec((1, out_pad[li]), lambda i: (0, 0)))
    out_specs = pl.BlockSpec((tb, out_pad[-1]), lambda i: (i, 0))

    # ---- VMEM budget: I/O tiles + resident params + fused intermediates ---
    out_sz = jnp.dtype(out_dtype).itemsize
    vmem_bytes = 2 * tb * in_pad[0] * 2              # obs tile, bf16, double-buffered
    vmem_bytes += 2 * tb * out_pad[-1] * out_sz      # out tile, double-buffered
    for li in range(num_layers):
        vmem_bytes += 2 * in_pad[li] * out_pad[li] * 2   # bf16 weights (dbl-buffered)
        vmem_bytes += 2 * out_pad[li] * 4                # f32 biases
        vmem_bytes += tb * out_pad[li] * (4 + 2)         # f32 y + bf16 x intermediates
    cap = (_vmem_physical_bytes() * 3) // 4              # ~48 MiB v7x, ~96 MiB v5e/v6e
    vmem_limit = int(min(max(vmem_bytes + (16 << 20), 32 << 20), cap))

    kernel = functools.partial(_mlp_kernel, num_layers=num_layers,
                               act_lim=float(act_lim))

    out_p = pl.pallas_call(
        kernel,
        out_shape=jax.ShapeDtypeStruct((batch_p, out_pad[-1]), out_dtype),
        grid=grid,
        in_specs=in_specs,
        out_specs=out_specs,
        compiler_params=pltpu.CompilerParams(
            dimension_semantics=("parallel",),       # shard batch across TCs (v7x)
            vmem_limit_bytes=vmem_limit),
    )(*args)

    return out_p[:batch, :act_dim]


# --------------------------------------------------------------------------- #
# Deterministic synthetic init (torch nn.Linear-style fan-in uniform)
# --------------------------------------------------------------------------- #
def init_params(key, obs_dim, act_dim, hidden_sizes):
    sizes = [obs_dim] + list(hidden_sizes) + [act_dim]
    weights, biases = [], []
    for i in range(len(sizes) - 1):
        key, kw, kb = jax.random.split(key, 3)
        bound = 1.0 / jnp.sqrt(sizes[i])
        # stored as (in, out) == torch weight (out, in) transposed
        w = jax.random.uniform(kw, (sizes[i], sizes[i + 1]),
                               minval=-bound, maxval=bound, dtype=jnp.float32)
        b = jax.random.uniform(kb, (1, sizes[i + 1]),
                               minval=-bound, maxval=bound, dtype=jnp.float32)
        weights.append(w)
        biases.append(b)
    return weights, biases


if __name__ == "__main__":
    obs_dim = 16
    act_dim = 8
    hidden_sizes = [32, 32]
    act_lim = 2.0
    batch = 32              # small test batch; batch_tile=16 -> 2-step grid

    key = jax.random.PRNGKey(0)
    key, kobs = jax.random.split(key)
    obs = jax.random.normal(kobs, (batch, obs_dim), dtype=jnp.float32)

    weights, biases = init_params(key, obs_dim, act_dim, hidden_sizes)

    # One-time parameter padding / bf16 cast (outside the per-step hot path).
    w_pad, b_pad, act_dim_out = prepare_params(weights, biases)

    fwd = jax.jit(lambda o, ws, bs: policy_network_forward(
        o, ws, bs, act_dim=act_dim_out, act_lim=act_lim,
        batch_tile=16, out_dtype=jnp.float32))

    out = jax.block_until_ready(fwd(obs, w_pad, b_pad))
    assert out.shape == (batch, act_dim)

    # Pure-JAX reference with the same bf16-operand / f32-accumulate math.
    x = obs.astype(jnp.bfloat16)
    for i in range(len(weights) - 1):
        y = jnp.dot(x, weights[i].astype(jnp.bfloat16),
                    preferred_element_type=jnp.float32) + biases[i]
        x = jnp.maximum(y, 0.0).astype(jnp.bfloat16)
    y = jnp.dot(x, weights[-1].astype(jnp.bfloat16),
                preferred_element_type=jnp.float32) + biases[-1]
    ref_bf16 = act_lim * jnp.tanh(y)
    assert jnp.allclose(out, ref_bf16, atol=1e-5, rtol=1e-4), (
        jnp.max(jnp.abs(out - ref_bf16)))

    # Sanity check vs. full-f32 PyTorch-equivalent math (loose tolerance for
    # the bf16 weight/activation quantization).
    x = obs
    for i in range(len(weights) - 1):
        x = jnp.maximum(x @ weights[i] + biases[i], 0.0)
    ref_f32 = act_lim * jnp.tanh(x @ weights[-1] + biases[-1])
    assert jnp.allclose(out, ref_f32, atol=3e-2, rtol=3e-2), (
        jnp.max(jnp.abs(out - ref_f32)))

    print("KERNEL_OK")
</pallas_src>

<mosaic_0001>
module attributes {stable_mosaic.version = 11 : i64} {
  func.func @_mlp_kernel(%arg0: i32, %arg1: memref<16x16xbf16, #tpu.memory_space<vmem>>, %arg2: memref<16x128xbf16, #tpu.memory_space<vmem>>, %arg3: memref<1x128xf32, #tpu.memory_space<vmem>>, %arg4: memref<128x128xbf16, #tpu.memory_space<vmem>>, %arg5: memref<1x128xf32, #tpu.memory_space<vmem>>, %arg6: memref<128x128xbf16, #tpu.memory_space<vmem>>, %arg7: memref<1x128xf32, #tpu.memory_space<vmem>>, %arg8: memref<16x128xf32, #tpu.memory_space<vmem>>) attributes {dimension_semantics = [#tpu.dimension_semantics<parallel>], iteration_bounds = array<i64: 2>, scalar_prefetch = 0 : i64, scratch_operands = 0 : i64, tpu.core_type = #tpu.core_type<tc>, window_params = [{transform_indices = @transform_0, window_bounds = array<i64: 16, 16>}, {pipeline_mode = #tpu.pipeline_mode<synchronous>, transform_indices = @transform_1, window_bounds = array<i64: 16, 128>}, {pipeline_mode = #tpu.pipeline_mode<synchronous>, transform_indices = @transform_2, window_bounds = array<i64: 1, 128>}, {pipeline_mode = #tpu.pipeline_mode<synchronous>, transform_indices = @transform_3, window_bounds = array<i64: 128, 128>}, {pipeline_mode = #tpu.pipeline_mode<synchronous>, transform_indices = @transform_4, window_bounds = array<i64: 1, 128>}, {pipeline_mode = #tpu.pipeline_mode<synchronous>, transform_indices = @transform_5, window_bounds = array<i64: 128, 128>}, {pipeline_mode = #tpu.pipeline_mode<synchronous>, transform_indices = @transform_6, window_bounds = array<i64: 1, 128>}, {transform_indices = @transform_7, window_bounds = array<i64: 16, 128>}]} {
    %c0 = arith.constant 0 : index
    %c0_0 = arith.constant 0 : index
    %0 = vector.load %arg1[%c0, %c0_0] : memref<16x16xbf16, #tpu.memory_space<vmem>>, vector<16x16xbf16>
    %c0_1 = arith.constant 0 : index
    %c0_2 = arith.constant 0 : index
    %1 = vector.load %arg2[%c0_1, %c0_2] : memref<16x128xbf16, #tpu.memory_space<vmem>>, vector<16x128xbf16>
    %c0_3 = arith.constant 0 : index
    %c0_4 = arith.constant 0 : index
    %2 = vector.load %arg3[%c0_3, %c0_4] : memref<1x128xf32, #tpu.memory_space<vmem>>, vector<1x128xf32>
    %cst = arith.constant dense<0.000000e+00> : vector<16x128xf32>
    %3 = tpu.matmul %0, %1, %cst {dimension_numbers = #tpu.dot_dimension_numbers<[1], [0], [0], [1], [0, 0, 1, 1], [], []>} : vector<16x16xbf16>, vector<16x128xbf16>, vector<16x128xf32> -> vector<16x128xf32>
    %4 = vector.broadcast %2 : vector<1x128xf32> to vector<16x128xf32>
    %5 = arith.addf %3, %4 : vector<16x128xf32>
    %cst_5 = arith.constant 0.000000e+00 : f32
    %6 = vector.broadcast %cst_5 : f32 to vector<16x128xf32>
    %7 = arith.maximumf %5, %6 : vector<16x128xf32>
    %8 = arith.truncf %7 : vector<16x128xf32> to vector<16x128xbf16>
    %c0_6 = arith.constant 0 : index
    %c0_7 = arith.constant 0 : index
    %9 = vector.load %arg4[%c0_6, %c0_7] : memref<128x128xbf16, #tpu.memory_space<vmem>>, vector<128x128xbf16>
    %c0_8 = arith.constant 0 : index
    %c0_9 = arith.constant 0 : index
    %10 = vector.load %arg5[%c0_8, %c0_9] : memref<1x128xf32, #tpu.memory_space<vmem>>, vector<1x128xf32>
    %cst_10 = arith.constant dense<0.000000e+00> : vector<16x128xf32>
    %11 = tpu.matmul %8, %9, %cst_10 {dimension_numbers = #tpu.dot_dimension_numbers<[1], [0], [0], [1], [0, 0, 1, 1], [], []>} : vector<16x128xbf16>, vector<128x128xbf16>, vector<16x128xf32> -> vector<16x128xf32>
    %12 = vector.broadcast %10 : vector<1x128xf32> to vector<16x128xf32>
    %13 = arith.addf %11, %12 : vector<16x128xf32>
    %cst_11 = arith.constant 0.000000e+00 : f32
    %14 = vector.broadcast %cst_11 : f32 to vector<16x128xf32>
    %15 = arith.maximumf %13, %14 : vector<16x128xf32>
    %16 = arith.truncf %15 : vector<16x128xf32> to vector<16x128xbf16>
    %c0_12 = arith.constant 0 : index
    %c0_13 = arith.constant 0 : index
    %17 = vector.load %arg6[%c0_12, %c0_13] : memref<128x128xbf16, #tpu.memory_space<vmem>>, vector<128x128xbf16>
    %c0_14 = arith.constant 0 : index
    %c0_15 = arith.constant 0 : index
    %18 = vector.load %arg7[%c0_14, %c0_15] : memref<1x128xf32, #tpu.memory_space<vmem>>, vector<1x128xf32>
    %cst_16 = arith.constant dense<0.000000e+00> : vector<16x128xf32>
    %19 = tpu.matmul %16, %17, %cst_16 {dimension_numbers = #tpu.dot_dimension_numbers<[1], [0], [0], [1], [0, 0, 1, 1], [], []>} : vector<16x128xbf16>, vector<128x128xbf16>, vector<16x128xf32> -> vector<16x128xf32>
    %20 = vector.broadcast %18 : vector<1x128xf32> to vector<16x128xf32>
    %21 = arith.addf %19, %20 : vector<16x128xf32>
    %22 = math.tanh %21 : vector<16x128xf32>
    %cst_17 = arith.constant 2.000000e+00 : f32
    %23 = vector.broadcast %cst_17 : f32 to vector<16x128xf32>
    %24 = arith.mulf %23, %22 : vector<16x128xf32>
    %c0_18 = arith.constant 0 : index
    %c0_19 = arith.constant 0 : index
    %25 = vector.load %arg8[%c0_18, %c0_19] : memref<16x128xf32, #tpu.memory_space<vmem>>, vector<16x128xf32>
    tpu.vector_store %arg8[%c0_18, %c0_19], %24 {strides = array<i32>} : memref<16x128xf32, #tpu.memory_space<vmem>>, vector<16x128xf32>,
    return
  }
  func.func @transform_0(%arg0: i32) -> (i32, i32) {
    %c0_i32 = arith.constant 0 : i32
    %c0_i32_0 = arith.constant 0 : i32
    return %arg0, %c0_i32 : i32, i32
  }
  func.func @transform_1(%arg0: i32) -> (i32, i32) {
    %c0_i32 = arith.constant 0 : i32
    %c0_i32_0 = arith.constant 0 : i32
    %c0_i32_1 = arith.constant 0 : i32
    return %c0_i32, %c0_i32_0 : i32, i32
  }
  func.func @transform_2(%arg0: i32) -> (i32, i32) {
    %c0_i32 = arith.constant 0 : i32
    %c0_i32_0 = arith.constant 0 : i32
    %c0_i32_1 = arith.constant 0 : i32
    return %c0_i32, %c0_i32_0 : i32, i32
  }
  func.func @transform_3(%arg0: i32) -> (i32, i32) {
    %c0_i32 = arith.constant 0 : i32
    %c0_i32_0 = arith.constant 0 : i32
    %c0_i32_1 = arith.constant 0 : i32
    return %c0_i32, %c0_i32_0 : i32, i32
  }
  func.func @transform_4(%arg0: i32) -> (i32, i32) {
    %c0_i32 = arith.constant 0 : i32
    %c0_i32_0 = arith.constant 0 : i32
    %c0_i32_1 = arith.constant 0 : i32
    return %c0_i32, %c0_i32_0 : i32, i32
  }
  func.func @transform_5(%arg0: i32) -> (i32, i32) {
    %c0_i32 = arith.constant 0 : i32
    %c0_i32_0 = arith.constant 0 : i32
    %c0_i32_1 = arith.constant 0 : i32
    return %c0_i32, %c0_i32_0 : i32, i32
  }
  func.func @transform_6(%arg0: i32) -> (i32, i32) {
    %c0_i32 = arith.constant 0 : i32
    %c0_i32_0 = arith.constant 0 : i32
    %c0_i32_1 = arith.constant 0 : i32
    return %c0_i32, %c0_i32_0 : i32, i32
  }
  func.func @transform_7(%arg0: i32) -> (i32, i32) {
    %c0_i32 = arith.constant 0 : i32
    %c0_i32_0 = arith.constant 0 : i32
    return %arg0, %c0_i32 : i32, i32
  }
}

</mosaic_0001>

<llo_original>
// kernel: _lambda_.1
$region0: #{_lambda_.1}
  #allocation0 [shape = 'u32[]', space=smem, size = 0x4, offset = 0x4, fixed_abs, tag = 'smem constant byte address 0x4 - core index']
  #allocation1 [shape = 'u32[72,128]{1,0:T(1,128)}', space=vmem, size = 0x9000, scoped, tag = 'internal scratch']
  %s0 = inlined_call_operand.vmem [shape: bf16[32,16], index: 0, kind: input, shape index: {}]
  %s1 = inlined_call_operand.vmem [shape: bf16[16,128], index: 1, kind: input, shape index: {}]
  %s2 = inlined_call_operand.vmem [shape: f32[1,128], index: 2, kind: input, shape index: {}]
  %s3 = inlined_call_operand.hbm [shape: bf16[128,128], index: 3, kind: input, shape index: {}]
  %s4 = inlined_call_operand.vmem [shape: f32[1,128], index: 4, kind: input, shape index: {}]
  %s5 = inlined_call_operand.hbm [shape: bf16[128,128], index: 5, kind: input, shape index: {}]
  %s6 = inlined_call_operand.vmem [shape: f32[1,128], index: 6, kind: input, shape index: {}]
  %s7 = inlined_call_operand.vmem [shape: f32[32,128], index: 7, kind: output, shape index: {}]
  %s8 = sld [smem:[#allocation0]]
  $region69: #{_lambda_.1} parent=0
    _
  %s10 = ssub.s32 1, %s8
  %s11 = scalar_select 0, %s10, %s8
  $region1: #{_lambda_.1} parent=0
    #allocation2 [shape = 'u8[32768]{0}', space=vmem, size = 0x8000, scoped, tag = 'input window, operand 3, single buffered']
    #allocation3 [shape = 's32[2]{0}', space=sflag, size = 0x8, scoped, tag = 'scoped memory for _lambda_.1']
    #allocation4 [shape = 'u8[32768]{0}', space=vmem, size = 0x8000, scoped, tag = 'input window, operand 5, single buffered']
    #allocation5 [shape = 's32[1]{0}', space=sflag, size = 0x4, scoped, tag = 'scoped memory for _lambda_.1']
    %12 = vsyncpa [#allocation3], 0
    %13 = vsyncpa [#allocation5], 0
    loop: start=0, step=1, limit=4
    $region2: #{_lambda_.1} parent=1 // loop_pre_header
      _
    $region3: #{_lambda_.1} parent=1 // loop_header
      %s15 = sphi 0, %s19
      %p16 = scmp.ge.s32.totalorder %s15, 4
      %s25 = sphi 0, %s27
      %s28 = sphi 0, %s25
      %s29 = sphi 0, %s28
      %s45 = sphi 0, %s29
      %s49 = sphi 0, %s49
      %s51 = sphi 0, %s49
      %s52 = sphi 0, %s51
      %s66 = sphi 0, %s52
      %s70 = sphi 0, %s70
      %s72 = sphi 0, %s70
      %s73 = sphi 0, %s72
      %s87 = sphi 0, %s73
      %s91 = sphi 0, %s91
      %s93 = sphi 0, %s91
      %s94 = sphi 0, %s93
      %s108 = sphi 0, %s94
      %s112 = sphi 0, %s112
      %s114 = sphi 0, %s112
      %s115 = sphi 0, %s114
      %s129 = sphi 0, %s115
      %s133 = sphi 0, %s133
      %s135 = sphi 0, %s133
      %s136 = sphi 0, %s135
      %s150 = sphi 0, %s136
      %s154 = sphi 0, %s154
      %s156 = sphi 0, %s154
      %s157 = sphi 0, %s156
      %s171 = sphi 0, %s157
      %s177 = sphi 0, %s179
      %s180 = sphi 0, %s177
      %s181 = sphi 0, %s180
      %s197 = sphi 0, %s181
    $region4: #{_lambda_.1} parent=1 // loop_header_branch
      %18 = sbr.rel (%p16) target = $region8
    $region5: #{_lambda_.1} parent=1 // loop_body
      %s20 = ssub.s32 %s15, 1
      %s21 = ssub.s32 %s15, 2
      %s22 = sadd.s32 %s15, 1
      %s23 = ssub.s32 %s15, %s22
      %p24 = scmp.eq.s32.totalorder %s23, 0
      %s26 = sadd.s32 %s25, 1
      %s27 = scalar_select %p24, %s25, %s26
      %p30 = pneg %p24
      %p31 = scmp.eq.s32.totalorder %s15, 1
      %p32 = por %p30, %p31
      %p33 = scmp.ne.s32.totalorder %s25, %s28
      %p34 = scmp.eq.s32.totalorder %s15, 0
      %p35 = por %p33, %p34
      %p36 = scmp.ne.s32.totalorder %s25, %s28
      %p37 = scmp.eq.s32.totalorder %s20, 1
      %p38 = por %p36, %p37
      %p39 = scmp.ne.s32.totalorder %s28, %s29
      %p40 = scmp.eq.s32.totalorder %s20, 0
      %p41 = por %p39, %p40
      %p42 = scmp.ne.s32.totalorder %s28, %s29
      %p43 = scmp.eq.s32.totalorder %s21, 1
      %p44 = por %p42, %p43
      %p46 = scmp.ne.s32.totalorder %s29, %s45
      %p47 = scmp.eq.s32.totalorder %s21, 0
      %p48 = por %p46, %p47
      %s50 = sadd.s32 %s49, 1
      %p53 = scmp.eq.s32.totalorder %s15, 1
      %p54 = scmp.ne.s32.totalorder %s49, %s51
      %p55 = scmp.eq.s32.totalorder %s15, 0
      %p56 = por %p54, %p55
      %p57 = scmp.ne.s32.totalorder %s49, %s51
      %p58 = scmp.eq.s32.totalorder %s20, 1
      %p59 = por %p57, %p58
      %p60 = scmp.ne.s32.totalorder %s51, %s52
      %p61 = scmp.eq.s32.totalorder %s20, 0
      %p62 = por %p60, %p61
      %p63 = scmp.ne.s32.totalorder %s51, %s52
      %p64 = scmp.eq.s32.totalorder %s21, 1
      %p65 = por %p63, %p64
      %p67 = scmp.ne.s32.totalorder %s52, %s66
      %p68 = scmp.eq.s32.totalorder %s21, 0
      %p69 = por %p67, %p68
      %s71 = sadd.s32 %s70, 1
      %p74 = scmp.eq.s32.totalorder %s15, 1
      %p75 = scmp.ne.s32.totalorder %s70, %s72
      %p76 = scmp.eq.s32.totalorder %s15, 0
      %p77 = por %p75, %p76
      %p78 = scmp.ne.s32.totalorder %s70, %s72
      %p79 = scmp.eq.s32.totalorder %s20, 1
      %p80 = por %p78, %p79
      %p81 = scmp.ne.s32.totalorder %s72, %s73
      %p82 = scmp.eq.s32.totalorder %s20, 0
      %p83 = por %p81, %p82
      %p84 = scmp.ne.s32.totalorder %s72, %s73
      %p85 = scmp.eq.s32.totalorder %s21, 1
      %p86 = por %p84, %p85
      %p88 = scmp.ne.s32.totalorder %s73, %s87
      %p89 = scmp.eq.s32.totalorder %s21, 0
      %p90 = por %p88, %p89
      %s92 = sadd.s32 %s91, 1
      %p95 = scmp.eq.s32.totalorder %s15, 1
      %p96 = scmp.ne.s32.totalorder %s91, %s93
      %p97 = scmp.eq.s32.totalorder %s15, 0
      %p98 = por %p96, %p97
      %p99 = scmp.ne.s32.totalorder %s91, %s93
      %p100 = scmp.eq.s32.totalorder %s20, 1
      %p101 = por %p99, %p100
      %p102 = scmp.ne.s32.totalorder %s93, %s94
      %p103 = scmp.eq.s32.totalorder %s20, 0
      %p104 = por %p102, %p103
      %p105 = scmp.ne.s32.totalorder %s93, %s94
      %p106 = scmp.eq.s32.totalorder %s21, 1
      %p107 = por %p105, %p106
      %p109 = scmp.ne.s32.totalorder %s94, %s108
      %p110 = scmp.eq.s32.totalorder %s21, 0
      %p111 = por %p109, %p110
      %s113 = sadd.s32 %s112, 1
      %p116 = scmp.eq.s32.totalorder %s15, 1
      %p117 = scmp.ne.s32.totalorder %s112, %s114
      %p118 = scmp.eq.s32.totalorder %s15, 0
      %p119 = por %p117, %p118
      %p120 = scmp.ne.s32.totalorder %s112, %s114
      %p121 = scmp.eq.s32.totalorder %s20, 1
      %p122 = por %p120, %p121
      %p123 = scmp.ne.s32.totalorder %s114, %s115
      %p124 = scmp.eq.s32.totalorder %s20, 0
      %p125 = por %p123, %p124
      %p126 = scmp.ne.s32.totalorder %s114, %s115
      %p127 = scmp.eq.s32.totalorder %s21, 1
      %p128 = por %p126, %p127
      %p130 = scmp.ne.s32.totalorder %s115, %s129
      %p131 = scmp.eq.s32.totalorder %s21, 0
      %p132 = por %p130, %p131
      %s134 = sadd.s32 %s133, 1
      %p137 = scmp.eq.s32.totalorder %s15, 1
      %p138 = scmp.ne.s32.totalorder %s133, %s135
      %p139 = scmp.eq.s32.totalorder %s15, 0
      %p140 = por %p138, %p139
      %p141 = scmp.ne.s32.totalorder %s133, %s135
      %p142 = scmp.eq.s32.totalorder %s20, 1
      %p143 = por %p141, %p142
      %p144 = scmp.ne.s32.totalorder %s135, %s136
      %p145 = scmp.eq.s32.totalorder %s20, 0
      %p146 = por %p144, %p145
      %p147 = scmp.ne.s32.totalorder %s135, %s136
      %p148 = scmp.eq.s32.totalorder %s21, 1
      %p149 = por %p147, %p148
      %p151 = scmp.ne.s32.totalorder %s136, %s150
      %p152 = scmp.eq.s32.totalorder %s21, 0
      %p153 = por %p151, %p152
      %s155 = sadd.s32 %s154, 1
      %p158 = scmp.eq.s32.totalorder %s15, 1
      %p159 = scmp.ne.s32.totalorder %s154, %s156
      %p160 = scmp.eq.s32.totalorder %s15, 0
      %p161 = por %p159, %p160
      %p162 = scmp.ne.s32.totalorder %s154, %s156
      %p163 = scmp.eq.s32.totalorder %s20, 1
      %p164 = por %p162, %p163
      %p165 = scmp.ne.s32.totalorder %s156, %s157
      %p166 = scmp.eq.s32.totalorder %s20, 0
      %p167 = por %p165, %p166
      %p168 = scmp.ne.s32.totalorder %s156, %s157
      %p169 = scmp.eq.s32.totalorder %s21, 1
      %p170 = por %p168, %p169
      %p172 = scmp.ne.s32.totalorder %s157, %s171
      %p173 = scmp.eq.s32.totalorder %s21, 0
      %p174 = por %p172, %p173
      %s175 = ssub.s32 %s15, %s22
      %p176 = scmp.eq.s32.totalorder %s175, 0
      %s178 = sadd.s32 %s177, 1
      %s179 = scalar_select %p176, %s177, %s178
      %p182 = pneg %p176
      %p183 = scmp.eq.s32.totalorder %s15, 1
      %p184 = por %p182, %p183
      %p185 = scmp.ne.s32.totalorder %s177, %s180
      %p186 = scmp.eq.s32.totalorder %s15, 0
      %p187 = por %p185, %p186
      %p188 = scmp.ne.s32.totalorder %s177, %s180
      %p189 = scmp.eq.s32.totalorder %s20, 1
      %p190 = por %p188, %p189
      %p191 = scmp.ne.s32.totalorder %s180, %s181
      %p192 = scmp.eq.s32.totalorder %s20, 0
      %p193 = por %p191, %p192
      %p194 = scmp.ne.s32.totalorder %s180, %s181
      %p195 = scmp.eq.s32.totalorder %s21, 1
      %p196 = por %p194, %p195
      %p198 = scmp.ne.s32.totalorder %s181, %s197
      %p199 = scmp.eq.s32.totalorder %s21, 0
      %p200 = por %p198, %p199
      %p201 = scmp.le.s32.totalorder 1, %s15
      %p202 = scmp.lt.s32.totalorder %s15, 3
      %p203 = pnand %p201, %p202
      %p204 = pneg %p203
      // Predicated region
      $region9: #{_lambda_.1} parent=5 // pred_check
        _
      $region10: #{_lambda_.1} parent=5 // pred_check_branch
        %206 = sbr.rel (%p203) target = $region12
      $region11: #{_lambda_.1} parent=5 // pred_region
        %s207 = ssub.s32 %s15, 1
        // Predicated region
        $region13: #{_lambda_.1} parent=11 // pred_check
          %p208 = pneg %p62
        $region14: #{_lambda_.1} parent=11 // pred_check_branch
          %210 = sbr.rel (%p208) target = $region16
        $region15: #{_lambda_.1} parent=11 // pred_region
          _
        $region16: #{_lambda_.1} parent=11 // pred_fallthru
          _
        // Predicated region
        $region17: #{_lambda_.1} parent=11 // pred_check
          %p211 = pneg %p83
        $region18: #{_lambda_.1} parent=11 // pred_check_branch
          %213 = sbr.rel (%p211) target = $region20
        $region19: #{_lambda_.1} parent=11 // pred_region
          _
        $region20: #{_lambda_.1} parent=11 // pred_fallthru
          _
        // Predicated region
        $region21: #{_lambda_.1} parent=11 // pred_check
          %p214 = pneg %p104
        $region22: #{_lambda_.1} parent=11 // pred_check_branch
          %216 = sbr.rel (%p214) target = $region24
        $region23: #{_lambda_.1} parent=11 // pred_region
          %218 = vsyncadd [#allocation3], 0
          %s219 = sshll.u32 %s3, 4
          %s220 = int_to_ptr.hbm [resolvable:$true] %s219
          %s221 = sshll.u32 [#allocation2], 4
          %s222 = int_to_ptr.vmem [resolvable:$true] %s221
          %227 = dma.hbm_to_vmem [thread:$0]  %s220, 1024, %s222, [#allocation3], 64, 64, 4
        $region24: #{_lambda_.1} parent=11 // pred_fallthru
          _
        // Predicated region
        $region25: #{_lambda_.1} parent=11 // pred_check
          %p228 = pneg %p125
        $region26: #{_lambda_.1} parent=11 // pred_check_branch
          %230 = sbr.rel (%p228) target = $region28
        $region27: #{_lambda_.1} parent=11 // pred_region
          _
        $region28: #{_lambda_.1} parent=11 // pred_fallthru
          _
        // Predicated region
        $region29: #{_lambda_.1} parent=11 // pred_check
          %p231 = pneg %p146
        $region30: #{_lambda_.1} parent=11 // pred_check_branch
          %233 = sbr.rel (%p231) target = $region32
        $region31: #{_lambda_.1} parent=11 // pred_region
          %235 = vsyncadd [#allocation5], 0
          %s236 = sshll.u32 %s5, 4
          %s237 = int_to_ptr.hbm [resolvable:$true] %s236
          %s238 = sshll.u32 [#allocation4], 4
          %s239 = int_to_ptr.vmem [resolvable:$true] %s238
          %244 = dma.hbm_to_vmem [thread:$0]  %s237, 1024, %s239, [#allocation5], 64, 64, 4
        $region32: #{_lambda_.1} parent=11 // pred_fallthru
          _
        // Predicated region
        $region33: #{_lambda_.1} parent=11 // pred_check
          %p245 = pneg %p167
        $region34: #{_lambda_.1} parent=11 // pred_check_branch
          %247 = sbr.rel (%p245) target = $region36
        $region35: #{_lambda_.1} parent=11 // pred_region
          _
        $region36: #{_lambda_.1} parent=11 // pred_fallthru
          _
      $region12: #{_lambda_.1} parent=5 // pred_fallthru
        _
      %p248 = scmp.lt.s32.totalorder %s15, 2
      // Predicated region
      $region37: #{_lambda_.1} parent=5 // pred_check
        %p249 = pneg %p248
      $region38: #{_lambda_.1} parent=5 // pred_check_branch
        %251 = sbr.rel (%p249) target = $region40
      $region39: #{_lambda_.1} parent=5 // pred_region
        // Predicated region
        $region41: #{_lambda_.1} parent=39 // pred_check
          %p252 = pneg %p35
        $region42: #{_lambda_.1} parent=39 // pred_check_branch
          %254 = sbr.rel (%p252) target = $region44
        $region43: #{_lambda_.1} parent=39 // pred_region
          %s255 = smul.u32 2, %s15
          %p256 = scmp.lt.s32.totalorder %s255, 3
          %s257 = scalar_select %p256, %s255, 3
          %s258 = smul.addr %s257, 4
          %s259 = scalar_lea.vmem %s0, %s258
          %s260 = smul.u32 2, %s15
        $region44: #{_lambda_.1} parent=39 // pred_fallthru
          _
      $region40: #{_lambda_.1} parent=5 // pred_fallthru
        _
      %p261 = scmp.le.s32.totalorder 1, %s15
      %p262 = scmp.lt.s32.totalorder %s15, 3
      %p263 = pnand %p261, %p262
      %p264 = pneg %p263
      // Predicated region
      $region45: #{_lambda_.1} parent=5 // pred_check
        _
      $region46: #{_lambda_.1} parent=5 // pred_check_branch
        %266 = sbr.rel (%p263) target = $region48
      $region47: #{_lambda_.1} parent=5 // pred_region
        %s267 = ssub.s32 %s15, 1
        // Predicated region
        $region49: #{_lambda_.1} parent=47 // pred_check
          %p268 = pneg %p104
        $region50: #{_lambda_.1} parent=47 // pred_check_branch
          %270 = sbr.rel (%p268) target = $region52
        $region51: #{_lambda_.1} parent=47 // pred_region
          %272 = dma.done [#allocation3], 1024
        $region52: #{_lambda_.1} parent=47 // pred_fallthru
          _
        // Predicated region
        $region53: #{_lambda_.1} parent=47 // pred_check
          %p273 = pneg %p146
        $region54: #{_lambda_.1} parent=47 // pred_check_branch
          %275 = sbr.rel (%p273) target = $region56
        $region55: #{_lambda_.1} parent=47 // pred_region
          %277 = dma.done [#allocation5], 1024
        $region56: #{_lambda_.1} parent=47 // pred_fallthru
          _
        %s278 = smul.u32 2, %s20
        %p279 = scmp.lt.s32.totalorder %s278, 3
        %s280 = scalar_select %p279, %s278, 3
        %s281 = smul.addr %s280, 4
        %s282 = scalar_lea.vmem %s0, %s281
        %p283 = pneg %p41
        %p284 = pneg %p38
        %p285 = pneg %p62
        %p286 = pneg %p59
        %p287 = pneg %p83
        %p288 = pneg %p80
        %p289 = pneg %p104
        %p290 = pneg %p101
        %p291 = pneg %p125
        %p292 = pneg %p122
        %p293 = pneg %p146
        %p294 = pneg %p143
        %p295 = pneg %p167
        %p296 = pneg %p164
        %p297 = pneg %p193
        %p298 = pneg %p190
        %s299 = smul.u32 2, %s20
        %p300 = scmp.lt.s32.totalorder %s299, 3
        %s301 = scalar_select %p300, %s299, 3
        %s302 = smul.addr %s301, 8
        %s303 = scalar_lea.vmem %s7, %s302
        %s304 = smul.u32 2, %s20
        %p305 = scmp.lt.s32.totalorder %s304, 3
        %s306 = scalar_select %p305, %s304, 3
        %s307 = smul.addr %s306, 4
        %s308 = scalar_lea.vmem %s0, %s307
        %s309 = smul.u32 2, %s20
        %s310 = smul.u32 2, %s20
        %p311 = scmp.lt.s32.totalorder %s310, 3
        %s312 = scalar_select %p311, %s310, 3
        %s313 = smul.addr %s312, 8
        %s314 = scalar_lea.vmem %s7, %s313
        %s315 = smul.u32 2, %s20
        %v317 = vld [vmem:[%s308] sm:$0xf]
        %v318 = vld [vmem:[%s308 + $0x4] sm:$0xf]
        %v319 = vld [vmem:[%s1] sm:$0xf]
        %v320 = vld [vmem:[%s1 + $0x4] sm:$0xf]
        %v321 = vld [vmem:[%s2] sm:$0x1]
        %v323 = vperm.slane %v321, 0
        %v327 = vunpack.c.l.b16 %v317
        %v328 = vunpack.c.l.b16 %v318
        %v329 = vpack.c.b16 %v328, %v327
        %v332 = vunpack.c.l.b16 %v319
        %v333 = vunpack.c.l.b16 %v320
        %v334 = vpack.c.b16 %v333, %v332
        %vm336 = vcmask 130048
        %v338 = vsel %vm336, %v329, 0
        %340 = vmatpush.bf16.msra.mxu0 0
        %341 = vmatpush.bf16.msra.mxu0 0
        %342 = vmatpush.bf16.msra.mxu0 0
        %343 = vmatpush.bf16.msra.mxu0 0
        %344 = vmatpush.bf16.msra.mxu0 0
        %345 = vmatpush.bf16.msra.mxu0 0
        %346 = vmatpush.bf16.msra.mxu0 0
        %347 = vmatpush.bf16.msra.mxu0 %v334
        %348 = vmatmul.bf16.gmra.mxu0 %v338
        %v349 = vpop.f32.mrf.mxu0
        %v350 = vadd.f32 %v323, %v349
        %v351 = vpop.f32.mrf.mxu0
        %v352 = vadd.f32 %v323, %v351
        %353 = vdwg.mxu0
        %v354 = vmax.f32 %v350, 0.0
        %v355 = vmax.f32 %v352, 0.0
        %v356 = vpack.c.bf16 %v355, %v354
        %v357 = vld [vmem:[#allocation2] sm:$0xf]
        %v358 = vld [vmem:[#allocation2 + $0x4] sm:$0xf]
        %v359 = vld [vmem:[#allocation2 + $0x8] sm:$0xf]
        %v360 = vld [vmem:[#allocation2 + $0xc] sm:$0xf]
        %v361 = vld [vmem:[#allocation2 + $0x10] sm:$0xf]
        %v362 = vld [vmem:[#allocation2 + $0x14] sm:$0xf]
        %v363 = vld [vmem:[#allocation2 + $0x18] sm:$0xf]
        %v364 = vld [vmem:[#allocation2 + $0x1c] sm:$0xf]
        %v365 = vld [vmem:[#allocation2 + $0x20] sm:$0xf]
        %v366 = vld [vmem:[#allocation2 + $0x24] sm:$0xf]
        %v367 = vld [vmem:[#allocation2 + $0x28] sm:$0xf]
        %v368 = vld [vmem:[#allocation2 + $0x2c] sm:$0xf]
        %v369 = vld [vmem:[#allocation2 + $0x30] sm:$0xf]
        %v370 = vld [vmem:[#allocation2 + $0x34] sm:$0xf]
        %v371 = vld [vmem:[#allocation2 + $0x38] sm:$0xf]
        %v372 = vld [vmem:[#allocation2 + $0x3c] sm:$0xf]
        %v373 = vld [vmem:[%s4] sm:$0x1]
        %v375 = vperm.slane %v373, 0
        %v393 = vunpack.c.l.b16 %v357
        %v394 = vunpack.c.l.b16 %v358
        %v395 = vunpack.c.l.b16 %v359
        %v396 = vunpack.c.l.b16 %v360
        %v397 = vunpack.c.l.b16 %v361
        %v398 = vunpack.c.l.b16 %v362
        %v399 = vunpack.c.l.b16 %v363
        %v400 = vunpack.c.l.b16 %v364
        %v401 = vunpack.c.l.b16 %v365
        %v402 = vunpack.c.l.b16 %v366
        %v403 = vunpack.c.l.b16 %v367
        %v404 = vunpack.c.l.b16 %v368
        %v405 = vunpack.c.l.b16 %v369
        %v406 = vunpack.c.l.b16 %v370
        %v407 = vunpack.c.l.b16 %v371
        %v408 = vunpack.c.l.b16 %v372
        %v409 = vpack.c.b16 %v394, %v393
        %v410 = vpack.c.b16 %v396, %v395
        %v411 = vpack.c.b16 %v398, %v397
        %v412 = vpack.c.b16 %v400, %v399
        %v413 = vpack.c.b16 %v402, %v401
        %v414 = vpack.c.b16 %v404, %v403
        %v415 = vpack.c.b16 %v406, %v405
        %v416 = vpack.c.b16 %v408, %v407
        %425 = vmatpush.bf16.msra.mxu0 %v416
        %426 = vmatpush.bf16.msra.mxu0 %v415
        %427 = vmatpush.bf16.msra.mxu0 %v414
        %428 = vmatpush.bf16.msra.mxu0 %v413
        %429 = vmatpush.bf16.msra.mxu0 %v412
        %430 = vmatpush.bf16.msra.mxu0 %v411
        %431 = vmatpush.bf16.msra.mxu0 %v410
        %432 = vmatpush.bf16.msra.mxu0 %v409
        %433 = vmatmul.bf16.gmra.mxu0 %v356
        %v434 = vpop.f32.mrf.mxu0
        %v435 = vadd.f32 %v375, %v434
        %v436 = vpop.f32.mrf.mxu0
        %v437 = vadd.f32 %v375, %v436
        %438 = vdwg.mxu0
        %v439 = vmax.f32 %v435, 0.0
        %v440 = vmax.f32 %v437, 0.0
        %v441 = vpack.c.bf16 %v440, %v439
        %v442 = vld [vmem:[#allocation4] sm:$0xf]
        %v443 = vld [vmem:[#allocation4 + $0x4] sm:$0xf]
        %v444 = vld [vmem:[#allocation4 + $0x8] sm:$0xf]
        %v445 = vld [vmem:[#allocation4 + $0xc] sm:$0xf]
        %v446 = vld [vmem:[#allocation4 + $0x10] sm:$0xf]
        %v447 = vld [vmem:[#allocation4 + $0x14] sm:$0xf]
        %v448 = vld [vmem:[#allocation4 + $0x18] sm:$0xf]
        %v449 = vld [vmem:[#allocation4 + $0x1c] sm:$0xf]
        %v450 = vld [vmem:[#allocation4 + $0x20] sm:$0xf]
        %v451 = vld [vmem:[#allocation4 + $0x24] sm:$0xf]
        %v452 = vld [vmem:[#allocation4 + $0x28] sm:$0xf]
        %v453 = vld [vmem:[#allocation4 + $0x2c] sm:$0xf]
        %v454 = vld [vmem:[#allocation4 + $0x30] sm:$0xf]
        %v455 = vld [vmem:[#allocation4 + $0x34] sm:$0xf]
        %v456 = vld [vmem:[#allocation4 + $0x38] sm:$0xf]
        %v457 = vld [vmem:[#allocation4 + $0x3c] sm:$0xf]
        %v458 = vld [vmem:[%s6] sm:$0x1]
        %v460 = vperm.slane %v458, 0
        %v478 = vunpack.c.l.b16 %v442
        %v479 = vunpack.c.l.b16 %v443
        %v480 = vunpack.c.l.b16 %v444
        %v481 = vunpack.c.l.b16 %v445
        %v482 = vunpack.c.l.b16 %v446
        %v483 = vunpack.c.l.b16 %v447
        %v484 = vunpack.c.l.b16 %v448
        %v485 = vunpack.c.l.b16 %v449
        %v486 = vunpack.c.l.b16 %v450
        %v487 = vunpack.c.l.b16 %v451
        %v488 = vunpack.c.l.b16 %v452
        %v489 = vunpack.c.l.b16 %v453
        %v490 = vunpack.c.l.b16 %v454
        %v491 = vunpack.c.l.b16 %v455
        %v492 = vunpack.c.l.b16 %v456
        %v493 = vunpack.c.l.b16 %v457
        %v494 = vpack.c.b16 %v479, %v478
        %v495 = vpack.c.b16 %v481, %v480
        %v496 = vpack.c.b16 %v483, %v482
        %v497 = vpack.c.b16 %v485, %v484
        %v498 = vpack.c.b16 %v487, %v486
        %v499 = vpack.c.b16 %v489, %v488
        %v500 = vpack.c.b16 %v491, %v490
        %v501 = vpack.c.b16 %v493, %v492
        %510 = vmatpush.bf16.msra.mxu0 %v501
        %511 = vmatpush.bf16.msra.mxu0 %v500
        %512 = vmatpush.bf16.msra.mxu0 %v499
        %513 = vmatpush.bf16.msra.mxu0 %v498
        %514 = vmatpush.bf16.msra.mxu0 %v497
        %515 = vmatpush.bf16.msra.mxu0 %v496
        %516 = vmatpush.bf16.msra.mxu0 %v495
        %517 = vmatpush.bf16.msra.mxu0 %v494
        %518 = vmatmul.bf16.gmra.mxu0 %v441
        %v519 = vpop.f32.mrf.mxu0
        %v520 = vadd.f32 %v460, %v519
        %v521 = vpop.f32.mrf.mxu0
        %v522 = vadd.f32 %v460, %v521
        %523 = vdwg.mxu0
        %v524 = vtanh.pop %v520
        %v525 = vtanh.pop %v522
        %v526 = vmul.f32 %v524, 2.0
        %v527 = vmul.f32 %v525, 2.0
        %528 = vst [vmem:[%s314] sm:$0xff] %v526
        %529 = vst [vmem:[%s314 + $0x8] sm:$0xff] %v527
        %s530 = smul.u32 2, %s20
        %p531 = scmp.lt.s32.totalorder %s530, 3
        %s532 = scalar_select %p531, %s530, 3
        %s533 = smul.addr %s532, 8
        %s534 = scalar_lea.vmem %s7, %s533
        // Predicated region
        $region57: #{_lambda_.1} parent=47 // pred_check
          %p535 = pneg %p190
        $region58: #{_lambda_.1} parent=47 // pred_check_branch
          %537 = sbr.rel (%p535) target = $region60
        $region59: #{_lambda_.1} parent=47 // pred_region
          %s538 = smul.u32 2, %s20
        $region60: #{_lambda_.1} parent=47 // pred_fallthru
          _
      $region48: #{_lambda_.1} parent=5 // pred_fallthru
        _
      %p539 = scmp.le.s32.totalorder 2, %s15
      // Predicated region
      $region61: #{_lambda_.1} parent=5 // pred_check
        %p540 = pneg %p539
      $region62: #{_lambda_.1} parent=5 // pred_check_branch
        %542 = sbr.rel (%p540) target = $region64
      $region63: #{_lambda_.1} parent=5 // pred_region
        %s543 = ssub.s32 %s15, 2
        // Predicated region
        $region65: #{_lambda_.1} parent=63 // pred_check
          %p544 = pneg %p196
        $region66: #{_lambda_.1} parent=63 // pred_check_branch
          %546 = sbr.rel (%p544) target = $region68
        $region67: #{_lambda_.1} parent=63 // pred_region
          %s547 = smul.u32 2, %s21
          %p548 = scmp.lt.s32.totalorder %s547, 3
          %s549 = scalar_select %p548, %s547, 3
          %s550 = smul.addr %s549, 8
          %s551 = scalar_lea.vmem %s7, %s550
        $region68: #{_lambda_.1} parent=63 // pred_fallthru
          _
      $region64: #{_lambda_.1} parent=5 // pred_fallthru
        _
    $region6: #{_lambda_.1} parent=1 // loop_footer
      %s19 = sadd.s32 1, %s15
    $region7: #{_lambda_.1} parent=1 // loop_footer_branch
      %14 = sbr.rel target = $region3
    $region8: #{_lambda_.1} parent=1 // loop_exit
      _
    %552 = vsyncpa [#allocation3], 1
    %s553 = scalar_lea.sflag [#allocation3], 1
    %554 = vsyncpa %s553, 1
    %555 = vsyncpa [#allocation5], 1

</llo_original>
